<compile_context>
chip_gen: v6e
topology: v6e:2x2x1
jax: 0.10.0
libtpu: 0.0.40
codegen_flags: <defaults>
</compile_context>

<pallas_src>
import functools

import jax
import jax.numpy as jnp
from jax.experimental import pallas as pl
from jax.experimental.pallas import tpu as pltpu


def _club_kernel(x_ref, y_ref, ys_ref, w1_ref, b1_ref, w2_ref, b2_ref,
                 out_ref, acc_ref, *, batch, tile_b, y_dim, masked):
    t = pl.program_id(0)

    @pl.when(t == 0)
    def _init():
        acc_ref[0, 0] = jnp.float32(0.0)

    # ---- fused MLP: one matmul per layer for both branches (bf16 -> f32 acc)
    # layer 1: x @ [w1_mu | w1_lv]            -> (TB, 2h)
    h = jnp.maximum(
        jnp.dot(x_ref[...], w1_ref[...], preferred_element_type=jnp.float32)
        + b1_ref[...], 0.0)
    # layer 2: h @ [[w2_mu, 0], [0, w2_lv]]   -> (TB, [mu | logvar_pre])
    out2 = jnp.dot(h.astype(w2_ref.dtype), w2_ref[...],
                   preferred_element_type=jnp.float32) + b2_ref[...]
    mu = out2[:, :y_dim]
    logvar = jnp.tanh(out2[:, y_dim:])
    inv_var = jnp.exp(-logvar)                     # EUP, f32

    # ---- fused positive/negative epilogue (f32) ----------------------------
    yf = y_ref[...].astype(jnp.float32)
    ysf = ys_ref[...].astype(jnp.float32)
    diff = (yf - ysf) * (2.0 * mu - yf - ysf) * inv_var   # == positive - negative
    if masked:
        row = jax.lax.broadcasted_iota(jnp.int32, (tile_b, 1), 0) + t * tile_b
        diff = jnp.where(row < batch, diff, 0.0)

    acc_ref[0, 0] += jnp.sum(diff)

    @pl.when(t == pl.num_programs(0) - 1)
    def _finalize():
        out_ref[0, 0] = acc_ref[0, 0] * jnp.float32(0.5 / batch)


def fuse_params(params, mxu_dtype=jnp.bfloat16):
    """One-time fusion of the two MLP branches into single weight matrices."""
    h = params["w1_mu"].shape[1]
    y_dim = params["w2_mu"].shape[1]
    w1 = jnp.concatenate([params["w1_mu"], params["w1_lv"]], axis=1)   # (x, 2h)
    b1 = jnp.concatenate([params["b1_mu"], params["b1_lv"]], axis=1)   # (1, 2h)
    w2 = jnp.zeros((2 * h, 2 * y_dim), jnp.float32)
    w2 = w2.at[:h, :y_dim].set(params["w2_mu"])
    w2 = w2.at[h:, y_dim:].set(params["w2_lv"])                        # block-diag
    b2 = jnp.concatenate([params["b2_mu"], params["b2_lv"]], axis=1)   # (1, 2y)
    return dict(w1=w1.astype(mxu_dtype), b1=b1.astype(jnp.float32),
                w2=w2.astype(mxu_dtype), b2=b2.astype(jnp.float32))


def club_sample_forward(x, y, perm, fused, *, tile_b=512):
    B, x_dim = x.shape
    y_dim = y.shape[1]
    mxu_dtype = fused["w1"].dtype

    # TODO(synk): the y[perm] row gather stays in the wrapper (one XLA gather);
    # an arbitrary per-row permutation cannot be expressed by a tiled BlockSpec
    # and a per-row in-kernel DMA gather would be slower at these row sizes.
    y_shuf = y[perm]

    xb = x.astype(mxu_dtype)
    yb = y.astype(mxu_dtype)
    ysb = y_shuf.astype(mxu_dtype)

    # batch tile: multiple of 16 sublanes for bf16 (8 for f32), capped at B.
    sub = 16 if jnp.dtype(mxu_dtype).itemsize == 2 else 8
    tb = min(tile_b, ((B + sub - 1) // sub) * sub)
    tb = ((tb + sub - 1) // sub) * sub
    n_tiles = (B + tb - 1) // tb
    b_pad = n_tiles * tb
    if b_pad != B:
        pad = ((0, b_pad - B), (0, 0))
        xb, yb, ysb = jnp.pad(xb, pad), jnp.pad(yb, pad), jnp.pad(ysb, pad)

    kernel = functools.partial(_club_kernel, batch=B, tile_b=tb,
                               y_dim=y_dim, masked=(b_pad != B))

    def row_spec(d):
        return pl.BlockSpec((tb, d), lambda t: (t, 0))

    def const_spec(shp):
        return pl.BlockSpec(shp, lambda t: (0, 0))

    out = pl.pallas_call(
        kernel,
        out_shape=jax.ShapeDtypeStruct((1, 1), jnp.float32),
        grid_spec=pltpu.PrefetchScalarGridSpec(
            num_scalar_prefetch=0,
            grid=(n_tiles,),
            in_specs=[
                row_spec(x_dim), row_spec(y_dim), row_spec(y_dim),
                const_spec(fused["w1"].shape), const_spec(fused["b1"].shape),
                const_spec(fused["w2"].shape), const_spec(fused["b2"].shape),
            ],
            out_specs=pl.BlockSpec(memory_space=pltpu.MemorySpace.SMEM),
            scratch_shapes=[pltpu.SMEM((1, 1), jnp.float32)],
        ),
        compiler_params=pltpu.CompilerParams(
            dimension_semantics=("arbitrary",)),
    )(xb, yb, ysb, fused["w1"], fused["b1"], fused["w2"], fused["b2"])
    return out[0, 0]


def init_linear(key, fan_in, fan_out):
    # PyTorch nn.Linear default init: U(-1/sqrt(fan_in), 1/sqrt(fan_in)).
    kw, kb = jax.random.split(key)
    bound = 1.0 / jnp.sqrt(fan_in)
    w = jax.random.uniform(kw, (fan_in, fan_out), jnp.float32, -bound, bound)
    b = jax.random.uniform(kb, (1, fan_out), jnp.float32, -bound, bound)
    return w, b


def make_params(key, x_dim, y_dim, hidden_size):
    h = hidden_size // 2
    k1, k2, k3, k4 = jax.random.split(key, 4)
    w1m, b1m = init_linear(k1, x_dim, h)
    w2m, b2m = init_linear(k2, h, y_dim)
    w1v, b1v = init_linear(k3, x_dim, h)
    w2v, b2v = init_linear(k4, h, y_dim)
    return dict(w1_mu=w1m, b1_mu=b1m, w2_mu=w2m, b2_mu=b2m,
                w1_lv=w1v, b1_lv=b1v, w2_lv=w2v, b2_lv=b2v)


def reference_forward(x, y, perm, params):
    """Pure-JAX reference (unfused math), mirroring the kernel's bf16 MXU
    operand rounding; epilogue in f32 like the original module."""
    def bf(a):
        return a.astype(jnp.bfloat16).astype(jnp.float32)
    x_, y_, ys_ = bf(x), bf(y), bf(y[perm])
    h_mu = jnp.maximum(x_ @ bf(params["w1_mu"]) + params["b1_mu"], 0.0)
    h_lv = jnp.maximum(x_ @ bf(params["w1_lv"]) + params["b1_lv"], 0.0)
    mu = bf(h_mu) @ bf(params["w2_mu"]) + params["b2_mu"]
    logvar = jnp.tanh(bf(h_lv) @ bf(params["w2_lv"]) + params["b2_lv"])
    inv_var = jnp.exp(-logvar)
    positive = -(mu - y_) ** 2 * inv_var
    negative = -(mu - ys_) ** 2 * inv_var
    return (positive.sum(-1) - negative.sum(-1)).mean() / 2.0


if __name__ == "__main__":
    # Small shapes consistent with the module; B chosen so the grid has 2 tiles
    # and the padded-row mask path is exercised (24 rows -> 2 tiles of 16).
    B, X_DIM, Y_DIM, HIDDEN = 24, 32, 32, 32

    key = jax.random.PRNGKey(0)
    kx, ky, kp, kperm = jax.random.split(key, 4)

    x = jax.random.normal(kx, (B, X_DIM), jnp.float32)
    y = jax.random.normal(ky, (B, Y_DIM), jnp.float32)
    params = make_params(kp, X_DIM, Y_DIM, HIDDEN)

    # torch.randperm equivalent (computed outside the kernel, passed as data)
    perm = jax.random.permutation(kperm, B)

    fused = fuse_params(params)
    out = club_sample_forward(x, y, perm, fused, tile_b=16)
    out = jax.block_until_ready(out)

    ref = reference_forward(x, y, perm, params)
    assert jnp.allclose(out, ref, atol=1e-4, rtol=1e-4), (out, ref)

    print("KERNEL_OK")
</pallas_src>

<mosaic_0001>
module attributes {stable_mosaic.version = 11 : i64} {
  func.func @_club_kernel(%arg0: i32, %arg1: memref<16x32xbf16, #tpu.memory_space<vmem>>, %arg2: memref<16x32xbf16, #tpu.memory_space<vmem>>, %arg3: memref<16x32xbf16, #tpu.memory_space<vmem>>, %arg4: memref<32x32xbf16, #tpu.memory_space<vmem>>, %arg5: memref<1x32xf32, #tpu.memory_space<vmem>>, %arg6: memref<32x64xbf16, #tpu.memory_space<vmem>>, %arg7: memref<1x64xf32, #tpu.memory_space<vmem>>, %arg8: memref<1x1xf32, #tpu.memory_space<smem>>, %arg9: memref<1x1xf32, #tpu.memory_space<smem>>) attributes {dimension_semantics = [#tpu.dimension_semantics<arbitrary>], iteration_bounds = array<i64: 2>, scalar_prefetch = 0 : i64, scratch_operands = 1 : i64, tpu.core_type = #tpu.core_type<tc>, window_params = [{transform_indices = @transform_0, window_bounds = array<i64: 16, 32>}, {transform_indices = @transform_1, window_bounds = array<i64: 16, 32>}, {transform_indices = @transform_2, window_bounds = array<i64: 16, 32>}, {pipeline_mode = #tpu.pipeline_mode<synchronous>, transform_indices = @transform_3, window_bounds = array<i64: 32, 32>}, {pipeline_mode = #tpu.pipeline_mode<synchronous>, transform_indices = @transform_4, window_bounds = array<i64: 1, 32>}, {pipeline_mode = #tpu.pipeline_mode<synchronous>, transform_indices = @transform_5, window_bounds = array<i64: 32, 64>}, {pipeline_mode = #tpu.pipeline_mode<synchronous>, transform_indices = @transform_6, window_bounds = array<i64: 1, 64>}, {transform_indices = @transform_7, window_bounds = array<i64: 1, 1>}]} {
    %c0_i32 = arith.constant 0 : i32
    %0 = arith.cmpi eq, %arg0, %c0_i32 : i32
    %1 = arith.extui %0 : i1 to i32
    %c0_i32_0 = arith.constant 0 : i32
    %2 = arith.cmpi ne, %1, %c0_i32_0 : i32
    scf.if %2 {
      %cst_25 = arith.constant 0.000000e+00 : f32
      %c0_26 = arith.constant 0 : index
      %c0_27 = arith.constant 0 : index
      %54 = memref.load %arg9[%c0_26, %c0_27] : memref<1x1xf32, #tpu.memory_space<smem>>
      memref.store %cst_25, %arg9[%c0_26, %c0_27] : memref<1x1xf32, #tpu.memory_space<smem>>
    } else {
    }
    %c0 = arith.constant 0 : index
    %c0_1 = arith.constant 0 : index
    %3 = vector.load %arg1[%c0, %c0_1] : memref<16x32xbf16, #tpu.memory_space<vmem>>, vector<16x32xbf16>
    %c0_2 = arith.constant 0 : index
    %c0_3 = arith.constant 0 : index
    %4 = vector.load %arg4[%c0_2, %c0_3] : memref<32x32xbf16, #tpu.memory_space<vmem>>, vector<32x32xbf16>
    %cst = arith.constant dense<0.000000e+00> : vector<16x32xf32>
    %5 = tpu.matmul %3, %4, %cst {dimension_numbers = #tpu.dot_dimension_numbers<[1], [0], [0], [1], [0, 0, 1, 1], [], []>} : vector<16x32xbf16>, vector<32x32xbf16>, vector<16x32xf32> -> vector<16x32xf32>
    %c0_4 = arith.constant 0 : index
    %c0_5 = arith.constant 0 : index
    %6 = vector.load %arg5[%c0_4, %c0_5] : memref<1x32xf32, #tpu.memory_space<vmem>>, vector<1x32xf32>
    %7 = vector.broadcast %6 : vector<1x32xf32> to vector<16x32xf32>
    %8 = arith.addf %5, %7 : vector<16x32xf32>
    %cst_6 = arith.constant 0.000000e+00 : f32
    %9 = vector.broadcast %cst_6 : f32 to vector<16x32xf32>
    %10 = arith.maximumf %8, %9 : vector<16x32xf32>
    %11 = arith.truncf %10 : vector<16x32xf32> to vector<16x32xbf16>
    %c0_7 = arith.constant 0 : index
    %c0_8 = arith.constant 0 : index
    %12 = vector.load %arg6[%c0_7, %c0_8] : memref<32x64xbf16, #tpu.memory_space<vmem>>, vector<32x64xbf16>
    %cst_9 = arith.constant dense<0.000000e+00> : vector<16x64xf32>
    %13 = tpu.matmul %11, %12, %cst_9 {dimension_numbers = #tpu.dot_dimension_numbers<[1], [0], [0], [1], [0, 0, 1, 1], [], []>} : vector<16x32xbf16>, vector<32x64xbf16>, vector<16x64xf32> -> vector<16x64xf32>
    %c0_10 = arith.constant 0 : index
    %c0_11 = arith.constant 0 : index
    %14 = vector.load %arg7[%c0_10, %c0_11] : memref<1x64xf32, #tpu.memory_space<vmem>>, vector<1x64xf32>
    %15 = vector.broadcast %14 : vector<1x64xf32> to vector<16x64xf32>
    %16 = arith.addf %13, %15 : vector<16x64xf32>
    %17 = vector.extract_strided_slice %16 {offsets = [0, 0], sizes = [16, 32], strides = [1, 1]} : vector<16x64xf32> to vector<16x32xf32>
    %18 = vector.extract_strided_slice %16 {offsets = [0, 32], sizes = [16, 32], strides = [1, 1]} : vector<16x64xf32> to vector<16x32xf32>
    %19 = math.tanh %18 : vector<16x32xf32>
    %cst_12 = arith.constant 0.000000e+00 : f32
    %20 = vector.broadcast %cst_12 : f32 to vector<16x32xf32>
    %21 = arith.subf %20, %19 : vector<16x32xf32>
    %22 = math.exp %21 : vector<16x32xf32>
    %c0_13 = arith.constant 0 : index
    %c0_14 = arith.constant 0 : index
    %23 = vector.load %arg2[%c0_13, %c0_14] : memref<16x32xbf16, #tpu.memory_space<vmem>>, vector<16x32xbf16>
    %24 = arith.extf %23 : vector<16x32xbf16> to vector<16x32xf32>
    %c0_15 = arith.constant 0 : index
    %c0_16 = arith.constant 0 : index
    %25 = vector.load %arg3[%c0_15, %c0_16] : memref<16x32xbf16, #tpu.memory_space<vmem>>, vector<16x32xbf16>
    %26 = arith.extf %25 : vector<16x32xbf16> to vector<16x32xf32>
    %27 = arith.subf %24, %26 : vector<16x32xf32>
    %cst_17 = arith.constant 2.000000e+00 : f32
    %28 = vector.broadcast %cst_17 : f32 to vector<16x32xf32>
    %29 = arith.mulf %28, %17 : vector<16x32xf32>
    %30 = arith.subf %29, %24 : vector<16x32xf32>
    %31 = arith.subf %30, %26 : vector<16x32xf32>
    %32 = arith.mulf %27, %31 : vector<16x32xf32>
    %33 = arith.mulf %32, %22 : vector<16x32xf32>
    %34 = tpu.iota {dimensions = array<i32: 0>} : vector<16x1xi32>
    %c16_i32 = arith.constant 16 : i32
    %35 = arith.muli %arg0, %c16_i32 : i32
    %36 = vector.broadcast %35 : i32 to vector<16x1xi32>
    %37 = arith.addi %34, %36 : vector<16x1xi32>
    %c24_i32 = arith.constant 24 : i32
    %38 = vector.broadcast %c24_i32 : i32 to vector<16x1xi32>
    %39 = arith.cmpi slt, %37, %38 : vector<16x1xi32>
    %cst_18 = arith.constant 0.000000e+00 : f32
    %40 = vector.shape_cast %39 : vector<16x1xi1> to vector<16x1xi1>
    %41 = vector.broadcast %40 : vector<16x1xi1> to vector<16x32xi1>
    %42 = vector.broadcast %cst_18 : f32 to vector<16x32xf32>
    %43 = arith.select %41, %33, %42 : vector<16x32xi1>, vector<16x32xf32>
    %c0_19 = arith.constant 0 : index
    %c0_20 = arith.constant 0 : index
    %44 = memref.load %arg9[%c0_19, %c0_20] : memref<1x1xf32, #tpu.memory_space<smem>>
    %45 = vector.shape_cast %43 : vector<16x32xf32> to vector<1x16x32xf32>
    %cst_21 = arith.constant dense<0.000000e+00> : vector<1xf32>
    %46 = vector.multi_reduction <add>, %45, %cst_21 [1, 2] : vector<1x16x32xf32> to vector<1xf32>
    %47 = vector.shape_cast %46 : vector<1xf32> to vector<1x1x1xf32>
    %48 = vector.extract %47[0, 0, 0] : f32 from vector<1x1x1xf32>
    %49 = arith.addf %44, %48 : f32
    %c0_22 = arith.constant 0 : index
    %c0_23 = arith.constant 0 : index
    %50 = memref.load %arg9[%c0_22, %c0_23] : memref<1x1xf32, #tpu.memory_space<smem>>
    memref.store %49, %arg9[%c0_22, %c0_23] : memref<1x1xf32, #tpu.memory_space<smem>>
    %c1_i32 = arith.constant 1 : i32
    %51 = arith.cmpi eq, %arg0, %c1_i32 : i32
    %52 = arith.extui %51 : i1 to i32
    %c0_i32_24 = arith.constant 0 : i32
    %53 = arith.cmpi ne, %52, %c0_i32_24 : i32
    scf.if %53 {
      %c0_25 = arith.constant 0 : index
      %c0_26 = arith.constant 0 : index
      %54 = memref.load %arg9[%c0_25, %c0_26] : memref<1x1xf32, #tpu.memory_space<smem>>
      %cst_27 = arith.constant 0.020833334 : f32
      %55 = arith.mulf %54, %cst_27 : f32
      %c0_28 = arith.constant 0 : index
      %c0_29 = arith.constant 0 : index
      %56 = memref.load %arg8[%c0_28, %c0_29] : memref<1x1xf32, #tpu.memory_space<smem>>
      memref.store %55, %arg8[%c0_28, %c0_29] : memref<1x1xf32, #tpu.memory_space<smem>>
    } else {
    }
    return
  }
  func.func @transform_0(%arg0: i32) -> (i32, i32) {
    %c0_i32 = arith.constant 0 : i32
    %c0_i32_0 = arith.constant 0 : i32
    return %arg0, %c0_i32 : i32, i32
  }
  func.func @transform_1(%arg0: i32) -> (i32, i32) {
    %c0_i32 = arith.constant 0 : i32
    %c0_i32_0 = arith.constant 0 : i32
    return %arg0, %c0_i32 : i32, i32
  }
  func.func @transform_2(%arg0: i32) -> (i32, i32) {
    %c0_i32 = arith.constant 0 : i32
    %c0_i32_0 = arith.constant 0 : i32
    return %arg0, %c0_i32 : i32, i32
  }
  func.func @transform_3(%arg0: i32) -> (i32, i32) {
    %c0_i32 = arith.constant 0 : i32
    %c0_i32_0 = arith.constant 0 : i32
    %c0_i32_1 = arith.constant 0 : i32
    return %c0_i32, %c0_i32_0 : i32, i32
  }
  func.func @transform_4(%arg0: i32) -> (i32, i32) {
    %c0_i32 = arith.constant 0 : i32
    %c0_i32_0 = arith.constant 0 : i32
    %c0_i32_1 = arith.constant 0 : i32
    return %c0_i32, %c0_i32_0 : i32, i32
  }
  func.func @transform_5(%arg0: i32) -> (i32, i32) {
    %c0_i32 = arith.constant 0 : i32
    %c0_i32_0 = arith.constant 0 : i32
    %c0_i32_1 = arith.constant 0 : i32
    return %c0_i32, %c0_i32_0 : i32, i32
  }
  func.func @transform_6(%arg0: i32) -> (i32, i32) {
    %c0_i32 = arith.constant 0 : i32
    %c0_i32_0 = arith.constant 0 : i32
    %c0_i32_1 = arith.constant 0 : i32
    return %c0_i32, %c0_i32_0 : i32, i32
  }
  func.func @transform_7(%arg0: i32) -> (i32, i32) {
    %c0_i32 = arith.constant 0 : i32
    %c0_i32_0 = arith.constant 0 : i32
    %c0_i32_1 = arith.constant 0 : i32
    return %c0_i32, %c0_i32_0 : i32, i32
  }
}

</mosaic_0001>

<llo_original>
// kernel: tpu_custom_call.1
$region0: #{tpu_custom_call.1}
  #allocation0 [shape = 'u32[]', space=smem, size = 0x4, offset = 0x4, fixed_abs, tag = 'smem constant byte address 0x4 - core index']
  #allocation1 [shape = 'u32[144,128]{1,0:T(1,128)}', space=vmem, size = 0x12000, scoped, tag = 'internal scratch']
  #allocation2 [shape = 'f32[1,1]{1,0:T(1,128)}', space=smem, size = 0x200, scoped, tag = 'scratch operand']
  %s0 = inlined_call_operand.hbm [shape: bf16[32,32], index: 0, kind: input, shape index: {}]
  %s1 = inlined_call_operand.hbm [shape: bf16[32,32], index: 1, kind: input, shape index: {}]
  %s2 = inlined_call_operand.hbm [shape: bf16[32,32], index: 2, kind: input, shape index: {}]
  %s3 = inlined_call_operand.hbm [shape: bf16[32,32], index: 3, kind: input, shape index: {}]
  %s4 = inlined_call_operand.vmem [shape: f32[1,32], index: 4, kind: input, shape index: {}]
  %s5 = inlined_call_operand.hbm [shape: bf16[32,64], index: 5, kind: input, shape index: {}]
  %s6 = inlined_call_operand.vmem [shape: f32[1,64], index: 6, kind: input, shape index: {}]
  %s7 = inlined_call_operand.hbm [shape: f32[1,1], index: 7, kind: output, shape index: {}]
  %s8 = sld [smem:[#allocation0]]
  $region89: #{tpu_custom_call.1} parent=0
    _
  %s10 = ssub.s32 1, %s8
  %s11 = scalar_select 0, %s10, %s8
  $region1: #{tpu_custom_call.1} parent=0
    #allocation3 [shape = 'u8[8192]{0}', space=vmem, size = 0x2000, scoped, tag = 'input window, operand 0']
    #allocation4 [shape = 's32[2]{0}', space=sflag, size = 0x8, scoped, tag = 'scoped memory for tpu_custom_call.1']
    #allocation5 [shape = 's32[2]{0}', space=sflag, size = 0x8, scoped, tag = 'scoped memory for tpu_custom_call.1']
    #allocation6 [shape = 'u8[8192]{0}', space=vmem, size = 0x2000, scoped, tag = 'input window, operand 1']
    #allocation7 [shape = 's32[2]{0}', space=sflag, size = 0x8, scoped, tag = 'scoped memory for tpu_custom_call.1']
    #allocation8 [shape = 'u8[8192]{0}', space=vmem, size = 0x2000, scoped, tag = 'input window, operand 2']
    #allocation9 [shape = 'u8[8192]{0}', space=vmem, size = 0x2000, scoped, tag = 'input window, operand 3, single buffered']
    #allocation10 [shape = 's32[1]{0}', space=sflag, size = 0x4, scoped, tag = 'scoped memory for tpu_custom_call.1']
    #allocation11 [shape = 'u8[8192]{0}', space=vmem, size = 0x2000, scoped, tag = 'input window, operand 5, single buffered']
    #allocation12 [shape = 'u8[512]{0}', space=smem, size = 0x200, scoped, tag = 'output window, operand 0, single buffered']
    %12 = vsyncpa [#allocation4], 0
    %s13 = scalar_lea.sflag [#allocation4], 1
    %14 = vsyncpa %s13, 0
    %15 = vsyncpa [#allocation7], 0
    %s16 = scalar_lea.sflag [#allocation7], 1
    %17 = vsyncpa %s16, 0
    %18 = vsyncpa [#allocation10], 0
    %19 = vsyncpa [#allocation5], 0
    loop: start=0, step=1, limit=4
    $region2: #{tpu_custom_call.1} parent=1 // loop_pre_header
      _
    $region3: #{tpu_custom_call.1} parent=1 // loop_header
      %s21 = sphi 0, %s25
      %p22 = scmp.ge.s32.totalorder %s21, 4
      %s31 = sphi 0, %s33
      %s34 = sphi 0, %s31
      %s35 = sphi 0, %s34
      %s51 = sphi 0, %s35
      %s57 = sphi 0, %s59
      %s60 = sphi 0, %s57
      %s61 = sphi 0, %s60
      %s77 = sphi 0, %s61
      %s83 = sphi 0, %s85
      %s86 = sphi 0, %s83
      %s87 = sphi 0, %s86
      %s103 = sphi 0, %s87
      %s107 = sphi 0, %s107
      %s109 = sphi 0, %s107
      %s110 = sphi 0, %s109
      %s124 = sphi 0, %s110
      %s128 = sphi 0, %s128
      %s130 = sphi 0, %s128
      %s131 = sphi 0, %s130
      %s145 = sphi 0, %s131
      %s149 = sphi 0, %s149
      %s151 = sphi 0, %s149
      %s152 = sphi 0, %s151
      %s166 = sphi 0, %s152
      %s170 = sphi 0, %s170
      %s172 = sphi 0, %s170
      %s173 = sphi 0, %s172
      %s187 = sphi 0, %s173
      %s191 = sphi 0, %s191
      %s193 = sphi 0, %s191
      %s194 = sphi 0, %s193
      %s208 = sphi 0, %s194
    $region4: #{tpu_custom_call.1} parent=1 // loop_header_branch
      %24 = sbr.rel (%p22) target = $region8
    $region5: #{tpu_custom_call.1} parent=1 // loop_body
      %s26 = ssub.s32 %s21, 1
      %s27 = ssub.s32 %s21, 2
      %s28 = sadd.s32 %s21, 1
      %s29 = ssub.s32 %s21, %s28
      %p30 = scmp.eq.s32.totalorder %s29, 0
      %s32 = sadd.s32 %s31, 1
      %s33 = scalar_select %p30, %s31, %s32
      %p36 = pneg %p30
      %p37 = scmp.eq.s32.totalorder %s21, 1
      %p38 = por %p36, %p37
      %p39 = scmp.ne.s32.totalorder %s31, %s34
      %p40 = scmp.eq.s32.totalorder %s21, 0
      %p41 = por %p39, %p40
      %p42 = scmp.ne.s32.totalorder %s31, %s34
      %p43 = scmp.eq.s32.totalorder %s26, 1
      %p44 = por %p42, %p43
      %p45 = scmp.ne.s32.totalorder %s34, %s35
      %p46 = scmp.eq.s32.totalorder %s26, 0
      %p47 = por %p45, %p46
      %p48 = scmp.ne.s32.totalorder %s34, %s35
      %p49 = scmp.eq.s32.totalorder %s27, 1
      %p50 = por %p48, %p49
      %p52 = scmp.ne.s32.totalorder %s35, %s51
      %p53 = scmp.eq.s32.totalorder %s27, 0
      %p54 = por %p52, %p53
      %s55 = ssub.s32 %s21, %s28
      %p56 = scmp.eq.s32.totalorder %s55, 0
      %s58 = sadd.s32 %s57, 1
      %s59 = scalar_select %p56, %s57, %s58
      %p62 = pneg %p56
      %p63 = scmp.eq.s32.totalorder %s21, 1
      %p64 = por %p62, %p63
      %p65 = scmp.ne.s32.totalorder %s57, %s60
      %p66 = scmp.eq.s32.totalorder %s21, 0
      %p67 = por %p65, %p66
      %p68 = scmp.ne.s32.totalorder %s57, %s60
      %p69 = scmp.eq.s32.totalorder %s26, 1
      %p70 = por %p68, %p69
      %p71 = scmp.ne.s32.totalorder %s60, %s61
      %p72 = scmp.eq.s32.totalorder %s26, 0
      %p73 = por %p71, %p72
      %p74 = scmp.ne.s32.totalorder %s60, %s61
      %p75 = scmp.eq.s32.totalorder %s27, 1
      %p76 = por %p74, %p75
      %p78 = scmp.ne.s32.totalorder %s61, %s77
      %p79 = scmp.eq.s32.totalorder %s27, 0
      %p80 = por %p78, %p79
      %s81 = ssub.s32 %s21, %s28
      %p82 = scmp.eq.s32.totalorder %s81, 0
      %s84 = sadd.s32 %s83, 1
      %s85 = scalar_select %p82, %s83, %s84
      %p88 = pneg %p82
      %p89 = scmp.eq.s32.totalorder %s21, 1
      %p90 = por %p88, %p89
      %p91 = scmp.ne.s32.totalorder %s83, %s86
      %p92 = scmp.eq.s32.totalorder %s21, 0
      %p93 = por %p91, %p92
      %p94 = scmp.ne.s32.totalorder %s83, %s86
      %p95 = scmp.eq.s32.totalorder %s26, 1
      %p96 = por %p94, %p95
      %p97 = scmp.ne.s32.totalorder %s86, %s87
      %p98 = scmp.eq.s32.totalorder %s26, 0
      %p99 = por %p97, %p98
      %p100 = scmp.ne.s32.totalorder %s86, %s87
      %p101 = scmp.eq.s32.totalorder %s27, 1
      %p102 = por %p100, %p101
      %p104 = scmp.ne.s32.totalorder %s87, %s103
      %p105 = scmp.eq.s32.totalorder %s27, 0
      %p106 = por %p104, %p105
      %s108 = sadd.s32 %s107, 1
      %p111 = scmp.eq.s32.totalorder %s21, 1
      %p112 = scmp.ne.s32.totalorder %s107, %s109
      %p113 = scmp.eq.s32.totalorder %s21, 0
      %p114 = por %p112, %p113
      %p115 = scmp.ne.s32.totalorder %s107, %s109
      %p116 = scmp.eq.s32.totalorder %s26, 1
      %p117 = por %p115, %p116
      %p118 = scmp.ne.s32.totalorder %s109, %s110
      %p119 = scmp.eq.s32.totalorder %s26, 0
      %p120 = por %p118, %p119
      %p121 = scmp.ne.s32.totalorder %s109, %s110
      %p122 = scmp.eq.s32.totalorder %s27, 1
      %p123 = por %p121, %p122
      %p125 = scmp.ne.s32.totalorder %s110, %s124
      %p126 = scmp.eq.s32.totalorder %s27, 0
      %p127 = por %p125, %p126
      %s129 = sadd.s32 %s128, 1
      %p132 = scmp.eq.s32.totalorder %s21, 1
      %p133 = scmp.ne.s32.totalorder %s128, %s130
      %p134 = scmp.eq.s32.totalorder %s21, 0
      %p135 = por %p133, %p134
      %p136 = scmp.ne.s32.totalorder %s128, %s130
      %p137 = scmp.eq.s32.totalorder %s26, 1
      %p138 = por %p136, %p137
      %p139 = scmp.ne.s32.totalorder %s130, %s131
      %p140 = scmp.eq.s32.totalorder %s26, 0
      %p141 = por %p139, %p140
      %p142 = scmp.ne.s32.totalorder %s130, %s131
      %p143 = scmp.eq.s32.totalorder %s27, 1
      %p144 = por %p142, %p143
      %p146 = scmp.ne.s32.totalorder %s131, %s145
      %p147 = scmp.eq.s32.totalorder %s27, 0
      %p148 = por %p146, %p147
      %s150 = sadd.s32 %s149, 1
      %p153 = scmp.eq.s32.totalorder %s21, 1
      %p154 = scmp.ne.s32.totalorder %s149, %s151
      %p155 = scmp.eq.s32.totalorder %s21, 0
      %p156 = por %p154, %p155
      %p157 = scmp.ne.s32.totalorder %s149, %s151
      %p158 = scmp.eq.s32.totalorder %s26, 1
      %p159 = por %p157, %p158
      %p160 = scmp.ne.s32.totalorder %s151, %s152
      %p161 = scmp.eq.s32.totalorder %s26, 0
      %p162 = por %p160, %p161
      %p163 = scmp.ne.s32.totalorder %s151, %s152
      %p164 = scmp.eq.s32.totalorder %s27, 1
      %p165 = por %p163, %p164
      %p167 = scmp.ne.s32.totalorder %s152, %s166
      %p168 = scmp.eq.s32.totalorder %s27, 0
      %p169 = por %p167, %p168
      %s171 = sadd.s32 %s170, 1
      %p174 = scmp.eq.s32.totalorder %s21, 1
      %p175 = scmp.ne.s32.totalorder %s170, %s172
      %p176 = scmp.eq.s32.totalorder %s21, 0
      %p177 = por %p175, %p176
      %p178 = scmp.ne.s32.totalorder %s170, %s172
      %p179 = scmp.eq.s32.totalorder %s26, 1
      %p180 = por %p178, %p179
      %p181 = scmp.ne.s32.totalorder %s172, %s173
      %p182 = scmp.eq.s32.totalorder %s26, 0
      %p183 = por %p181, %p182
      %p184 = scmp.ne.s32.totalorder %s172, %s173
      %p185 = scmp.eq.s32.totalorder %s27, 1
      %p186 = por %p184, %p185
      %p188 = scmp.ne.s32.totalorder %s173, %s187
      %p189 = scmp.eq.s32.totalorder %s27, 0
      %p190 = por %p188, %p189
      %s192 = sadd.s32 %s191, 1
      %p195 = scmp.eq.s32.totalorder %s21, 1
      %p196 = scmp.ne.s32.totalorder %s191, %s193
      %p197 = scmp.eq.s32.totalorder %s21, 0
      %p198 = por %p196, %p197
      %p199 = scmp.ne.s32.totalorder %s191, %s193
      %p200 = scmp.eq.s32.totalorder %s26, 1
      %p201 = por %p199, %p200
      %p202 = scmp.ne.s32.totalorder %s193, %s194
      %p203 = scmp.eq.s32.totalorder %s26, 0
      %p204 = por %p202, %p203
      %p205 = scmp.ne.s32.totalorder %s193, %s194
      %p206 = scmp.eq.s32.totalorder %s27, 1
      %p207 = por %p205, %p206
      %p209 = scmp.ne.s32.totalorder %s194, %s208
      %p210 = scmp.eq.s32.totalorder %s27, 0
      %p211 = por %p209, %p210
      %p212 = scmp.le.s32.totalorder 1, %s21
      %p213 = scmp.lt.s32.totalorder %s21, 3
      %p214 = pnand %p212, %p213
      %p215 = pneg %p214
      // Predicated region
      $region9: #{tpu_custom_call.1} parent=5 // pred_check
        _
      $region10: #{tpu_custom_call.1} parent=5 // pred_check_branch
        %217 = sbr.rel (%p214) target = $region12
      $region11: #{tpu_custom_call.1} parent=5 // pred_region
        %s218 = ssub.s32 %s21, 1
        // Predicated region
        $region13: #{tpu_custom_call.1} parent=11 // pred_check
          %p219 = pneg %p120
        $region14: #{tpu_custom_call.1} parent=11 // pred_check_branch
          %221 = sbr.rel (%p219) target = $region16
        $region15: #{tpu_custom_call.1} parent=11 // pred_region
          %s223 = ssub.s32 256, 256
          %224 = vsyncadd [#allocation10], %s223
          %s225 = sshll.u32 [#allocation9], 4
          %s226 = int_to_ptr.vmem [resolvable:$true] %s225
          %231 = dma.hbm_to_vmem [thread:$0]  %s3, 256, %s226, [#allocation10], 64, 64, 4
        $region16: #{tpu_custom_call.1} parent=11 // pred_fallthru
          _
        // Predicated region
        $region17: #{tpu_custom_call.1} parent=11 // pred_check
          %p232 = pneg %p141
        $region18: #{tpu_custom_call.1} parent=11 // pred_check_branch
          %234 = sbr.rel (%p232) target = $region20
        $region19: #{tpu_custom_call.1} parent=11 // pred_region
          _
        $region20: #{tpu_custom_call.1} parent=11 // pred_fallthru
          _
        // Predicated region
        $region21: #{tpu_custom_call.1} parent=11 // pred_check
          %p235 = pneg %p162
        $region22: #{tpu_custom_call.1} parent=11 // pred_check_branch
          %237 = sbr.rel (%p235) target = $region24
        $region23: #{tpu_custom_call.1} parent=11 // pred_region
          %s239 = ssub.s32 256, 256
          %240 = vsyncadd [#allocation10], %s239
          %s241 = sshll.u32 [#allocation11], 4
          %s242 = int_to_ptr.vmem [resolvable:$true] %s241
          %247 = dma.hbm_to_vmem [thread:$0]  %s5, 256, %s242, [#allocation10], 64, 64, 4
        $region24: #{tpu_custom_call.1} parent=11 // pred_fallthru
          _
        // Predicated region
        $region25: #{tpu_custom_call.1} parent=11 // pred_check
          %p248 = pneg %p183
        $region26: #{tpu_custom_call.1} parent=11 // pred_check_branch
          %250 = sbr.rel (%p248) target = $region28
        $region27: #{tpu_custom_call.1} parent=11 // pred_region
          _
        $region28: #{tpu_custom_call.1} parent=11 // pred_fallthru
          _
      $region12: #{tpu_custom_call.1} parent=5 // pred_fallthru
        _
      %p251 = scmp.lt.s32.totalorder %s21, 2
      // Predicated region
      $region29: #{tpu_custom_call.1} parent=5 // pred_check
        %p252 = pneg %p251
      $region30: #{tpu_custom_call.1} parent=5 // pred_check_branch
        %254 = sbr.rel (%p252) target = $region32
      $region31: #{tpu_custom_call.1} parent=5 // pred_region
        // Predicated region
        $region33: #{tpu_custom_call.1} parent=31 // pred_check
          %p255 = pneg %p41
        $region34: #{tpu_custom_call.1} parent=31 // pred_check_branch
          %257 = sbr.rel (%p255) target = $region36
        $region35: #{tpu_custom_call.1} parent=31 // pred_region
          %s258 = sand.u32 %s31, 1
          %s259 = scalar_lea.sflag [#allocation4], %s258
          %s260 = sand.u32 %s31, 1
          %s261 = smul.addr %s260, 8
          %s262 = scalar_lea.vmem [#allocation3], %s261
          %s263 = smul.u32 2, %s21
          %s265 = ssub.s32 128, 128
          %266 = vsyncadd %s259, %s265
          %s267 = smul.addr %s263, 64
          %s268 = scalar_lea.hbm %s0, %s267
          %s269 = sshll.u32 %s262, 4
          %s270 = int_to_ptr.vmem [resolvable:$true] %s269
          %275 = dma.hbm_to_vmem [thread:$0]  %s268, 128, %s270, %s259, 64, 64, 4
        $region36: #{tpu_custom_call.1} parent=31 // pred_fallthru
          _
        // Predicated region
        $region37: #{tpu_custom_call.1} parent=31 // pred_check
          %p276 = pneg %p67
        $region38: #{tpu_custom_call.1} parent=31 // pred_check_branch
          %278 = sbr.rel (%p276) target = $region40
        $region39: #{tpu_custom_call.1} parent=31 // pred_region
          %s279 = sand.u32 %s21, 1
          %s280 = scalar_lea.sflag [#allocation7], %s279
          %s281 = sand.u32 %s57, 1
          %s282 = smul.addr %s281, 8
          %s283 = scalar_lea.vmem [#allocation6], %s282
          %s284 = smul.u32 2, %s21
          %s286 = ssub.s32 128, 128
          %287 = vsyncadd %s280, %s286
          %s288 = smul.addr %s284, 64
          %s289 = scalar_lea.hbm %s1, %s288
          %s290 = sshll.u32 %s283, 4
          %s291 = int_to_ptr.vmem [resolvable:$true] %s290
          %296 = dma.hbm_to_vmem [thread:$0]  %s289, 128, %s291, %s280, 64, 64, 4
        $region40: #{tpu_custom_call.1} parent=31 // pred_fallthru
          _
        // Predicated region
        $region41: #{tpu_custom_call.1} parent=31 // pred_check
          %p297 = pneg %p93
        $region42: #{tpu_custom_call.1} parent=31 // pred_check_branch
          %299 = sbr.rel (%p297) target = $region44
        $region43: #{tpu_custom_call.1} parent=31 // pred_region
          %s300 = sand.u32 %s21, 1
          %s301 = scalar_lea.sflag [#allocation7], %s300
          %s302 = sand.u32 %s83, 1
          %s303 = smul.addr %s302, 8
          %s304 = scalar_lea.vmem [#allocation8], %s303
          %s305 = smul.u32 2, %s21
          %s307 = ssub.s32 128, 128
          %308 = vsyncadd %s301, %s307
          %s309 = smul.addr %s305, 64
          %s310 = scalar_lea.hbm %s2, %s309
          %s311 = sshll.u32 %s304, 4
          %s312 = int_to_ptr.vmem [resolvable:$true] %s311
          %317 = dma.hbm_to_vmem [thread:$0]  %s310, 128, %s312, %s301, 64, 64, 4
        $region44: #{tpu_custom_call.1} parent=31 // pred_fallthru
          _
      $region32: #{tpu_custom_call.1} parent=5 // pred_fallthru
        _
      %p318 = scmp.le.s32.totalorder 1, %s21
      %p319 = scmp.lt.s32.totalorder %s21, 3
      %p320 = pnand %p318, %p319
      %p321 = pneg %p320
      // Predicated region
      $region45: #{tpu_custom_call.1} parent=5 // pred_check
        _
      $region46: #{tpu_custom_call.1} parent=5 // pred_check_branch
        %323 = sbr.rel (%p320) target = $region48
      $region47: #{tpu_custom_call.1} parent=5 // pred_region
        %s324 = ssub.s32 %s21, 1
        %s325 = sand.u32 %s34, 1
        %s326 = scalar_lea.sflag [#allocation4], %s325
        %s327 = sand.u32 %s34, 1
        %s328 = smul.addr %s327, 8
        %s329 = scalar_lea.vmem [#allocation3], %s328
        // Predicated region
        $region49: #{tpu_custom_call.1} parent=47 // pred_check
          %p330 = pneg %p47
        $region50: #{tpu_custom_call.1} parent=47 // pred_check_branch
          %332 = sbr.rel (%p330) target = $region52
        $region51: #{tpu_custom_call.1} parent=47 // pred_region
          %333 = dma.done %s326, 128
        $region52: #{tpu_custom_call.1} parent=47 // pred_fallthru
          _
        %s334 = sand.u32 %s26, 1
        %s335 = scalar_lea.sflag [#allocation7], %s334
        %s336 = sand.u32 %s60, 1
        %s337 = smul.addr %s336, 8
        %s338 = scalar_lea.vmem [#allocation6], %s337
        // Predicated region
        $region53: #{tpu_custom_call.1} parent=47 // pred_check
          %p339 = pneg %p73
        $region54: #{tpu_custom_call.1} parent=47 // pred_check_branch
          %341 = sbr.rel (%p339) target = $region56
        $region55: #{tpu_custom_call.1} parent=47 // pred_region
          %342 = dma.done %s335, 128
        $region56: #{tpu_custom_call.1} parent=47 // pred_fallthru
          _
        %s343 = sand.u32 %s26, 1
        %s344 = scalar_lea.sflag [#allocation7], %s343
        %s345 = sand.u32 %s86, 1
        %s346 = smul.addr %s345, 8
        %s347 = scalar_lea.vmem [#allocation8], %s346
        // Predicated region
        $region57: #{tpu_custom_call.1} parent=47 // pred_check
          %p348 = pneg %p99
        $region58: #{tpu_custom_call.1} parent=47 // pred_check_branch
          %350 = sbr.rel (%p348) target = $region60
        $region59: #{tpu_custom_call.1} parent=47 // pred_region
          %351 = dma.done %s344, 128
        $region60: #{tpu_custom_call.1} parent=47 // pred_fallthru
          _
        // Predicated region
        $region61: #{tpu_custom_call.1} parent=47 // pred_check
          %p352 = pneg %p120
        $region62: #{tpu_custom_call.1} parent=47 // pred_check_branch
          %354 = sbr.rel (%p352) target = $region64
        $region63: #{tpu_custom_call.1} parent=47 // pred_region
          %355 = dma.done [#allocation10], 256
        $region64: #{tpu_custom_call.1} parent=47 // pred_fallthru
          _
        // Predicated region
        $region65: #{tpu_custom_call.1} parent=47 // pred_check
          %p356 = pneg %p162
        $region66: #{tpu_custom_call.1} parent=47 // pred_check_branch
          %358 = sbr.rel (%p356) target = $region68
        $region67: #{tpu_custom_call.1} parent=47 // pred_region
          %359 = dma.done [#allocation10], 256
        $region68: #{tpu_custom_call.1} parent=47 // pred_fallthru
          _
        %s360 = sand.u32 %s34, 1
        %s361 = scalar_lea.sflag [#allocation4], %s360
        %s362 = sand.u32 %s34, 1
        %s363 = smul.addr %s362, 8
        %s364 = scalar_lea.vmem [#allocation3], %s363
        %p365 = pneg %p47
        %p366 = pneg %p44
        %s367 = sand.u32 %s26, 1
        %s368 = scalar_lea.sflag [#allocation7], %s367
        %s369 = sand.u32 %s60, 1
        %s370 = smul.addr %s369, 8
        %s371 = scalar_lea.vmem [#allocation6], %s370
        %p372 = pneg %p73
        %p373 = pneg %p70
        %s374 = sand.u32 %s26, 1
        %s375 = scalar_lea.sflag [#allocation7], %s374
        %s376 = sand.u32 %s86, 1
        %s377 = smul.addr %s376, 8
        %s378 = scalar_lea.vmem [#allocation8], %s377
        %p379 = pneg %p99
        %p380 = pneg %p96
        %p381 = pneg %p120
        %p382 = pneg %p117
        %p383 = pneg %p141
        %p384 = pneg %p138
        %p385 = pneg %p162
        %p386 = pneg %p159
        %p387 = pneg %p183
        %p388 = pneg %p180
        %p389 = pneg %p204
        %p390 = pneg %p201
        %s391 = smul.u32 2, %s26
        %s392 = smul.u32 2, %s26
        %s393 = smul.u32 2, %s26
        %p395 = scmp.eq.s32.totalorder %s26, 0
        // Predicated region
        $region69: #{tpu_custom_call.1} parent=47 // pred_check
          %p396 = pneg %p395
        $region70: #{tpu_custom_call.1} parent=47 // pred_check_branch
          %398 = sbr.rel (%p396) target = $region72
        $region71: #{tpu_custom_call.1} parent=47 // pred_region
          %s399 = scalar_lea.smem [#allocation2], 0
          %400 = sst [smem:[%s399]] 0.0
        $region72: #{tpu_custom_call.1} parent=47 // pred_fallthru
          _
        %v401 = vld [vmem:[%s329] sm:$0xf]
        %v402 = vld [vmem:[%s329 + $0x4] sm:$0xf]
        %v403 = vld [vmem:[#allocation9] sm:$0xf]
        %v404 = vld [vmem:[#allocation9 + $0x4] sm:$0xf]
        %v405 = vld [vmem:[#allocation9 + $0x8] sm:$0xf]
        %v406 = vld [vmem:[#allocation9 + $0xc] sm:$0xf]
        %v407 = vld [vmem:[%s4] sm:$0x1]
        %v409 = vlaneseq
        %v410 = vshrl.u32 %v409, 7
        %v411 = vsub.s32 0, %v410
        %v412 = vrot.slane %v407, %v411
        %v416 = vunpack.c.l.b16 %v401
        %v417 = vunpack.c.l.b16 %v402
        %v418 = vpack.c.b16 %v417, %v416
        %v423 = vunpack.c.l.b16 %v403
        %v424 = vunpack.c.l.b16 %v404
        %v425 = vunpack.c.l.b16 %v405
        %v426 = vunpack.c.l.b16 %v406
        %v427 = vpack.c.b16 %v424, %v423
        %v428 = vpack.c.b16 %v426, %v425
        %vm431 = vcmask 261120
        %v433 = vsel %vm431, %v418, 0
        %435 = vmatprep.subr.bf16.mxu0 0
        %436 = vmatpush1.bf16.msra.mxu0 0
        %437 = vmatprep.subr.bf16.mxu0 0
        %438 = vmatpush1.bf16.msra.mxu0 0
        %439 = vmatprep.subr.bf16.mxu0 0
        %440 = vmatpush1.bf16.msra.mxu0 0
        %441 = vmatprep.subr.bf16.mxu0 0
        %442 = vmatpush1.bf16.msra.mxu0 0
        %443 = vmatprep.subr.bf16.mxu0 0
        %444 = vmatpush1.bf16.msra.mxu0 0
        %445 = vmatprep.subr.bf16.mxu0 0
        %446 = vmatpush1.bf16.msra.mxu0 0
        %447 = vmatprep.subr.bf16.mxu0 0
        %448 = vmatpush1.bf16.msra.mxu0 %v428
        %449 = vmatprep.subr.bf16.mxu0 0
        %450 = vmatpush1.bf16.msra.mxu0 %v427
        %451 = vmatprep.subr.bf16.mxu0 0
        %452 = vmatpush2.bf16.msra.mxu0 0
        %453 = vmatprep.subr.bf16.mxu0 0
        %454 = vmatpush2.bf16.msra.mxu0 0
        %455 = vmatprep.subr.bf16.mxu0 0
        %456 = vmatpush2.bf16.msra.mxu0 0
        %457 = vmatprep.subr.bf16.mxu0 0
        %458 = vmatpush2.bf16.msra.mxu0 0
        %459 = vmatprep.subr.bf16.mxu0 0
        %460 = vmatpush2.bf16.msra.mxu0 0
        %461 = vmatprep.subr.bf16.mxu0 0
        %462 = vmatpush2.bf16.msra.mxu0 0
        %463 = vmatprep.subr.bf16.mxu0 0
        %464 = vmatpush2.bf16.msra.mxu0 0
        %465 = vmatprep.subr.bf16.mxu0 0
        %466 = vmatpush2.bf16.msra.mxu0 0
        %467 = vmatprep.mubr.bf16.mxu0 0
        %468 = vmatmul.mubr.bf16.gmra.mxu0 %v433
        %v469 = vpop.f32.mrf.mxu0
        %v470 = vadd.f32 %v412, %v469
        %v471 = vpop.f32.mrf.mxu0
        %v472 = vpop.f32.mrf.mxu0
        %v473 = vadd.f32 %v412, %v472
        %v474 = vpop.f32.mrf.mxu0
        %475 = vdwg.mxu0
        %v476 = vmax.f32 %v470, 0.0
        %v477 = vmax.f32 %v473, 0.0
        %v478 = vpack.c.bf16 %v477, %v476
        %v479 = vld [vmem:[#allocation11] sm:$0xf]
        %v480 = vld [vmem:[#allocation11 + $0x4] sm:$0xf]
        %v481 = vld [vmem:[#allocation11 + $0x8] sm:$0xf]
        %v482 = vld [vmem:[#allocation11 + $0xc] sm:$0xf]
        %v483 = vld [vmem:[%s6] sm:$0x1]
        %v485 = vlaneseq
        %v486 = vshrl.u32 %v485, 7
        %v487 = vsub.s32 0, %v486
        %v488 = vrot.slane %v483, %v487
        %v494 = vunpack.c.l.b16 %v479
        %v495 = vunpack.c.l.b16 %v480
        %v496 = vunpack.c.l.b16 %v481
        %v497 = vunpack.c.l.b16 %v482
        %v498 = vpack.c.b16 %v495, %v494
        %v499 = vpack.c.b16 %v497, %v496
        %v503 = vsel %vm431, %v478, 0
        %505 = vmatprep.subr.bf16.mxu0 0
        %506 = vmatpush1.bf16.msra.mxu0 0
        %507 = vmatprep.subr.bf16.mxu0 0
        %508 = vmatpush1.bf16.msra.mxu0 0
        %509 = vmatprep.subr.bf16.mxu0 0
        %510 = vmatpush1.bf16.msra.mxu0 0
        %511 = vmatprep.subr.bf16.mxu0 0
        %512 = vmatpush1.bf16.msra.mxu0 0
        %513 = vmatprep.subr.bf16.mxu0 0
        %514 = vmatpush1.bf16.msra.mxu0 0
        %515 = vmatprep.subr.bf16.mxu0 0
        %516 = vmatpush1.bf16.msra.mxu0 0
        %517 = vmatprep.subr.bf16.mxu0 0
        %518 = vmatpush1.bf16.msra.mxu0 %v499
        %519 = vmatprep.subr.bf16.mxu0 0
        %520 = vmatpush1.bf16.msra.mxu0 %v498
        %521 = vmatprep.subr.bf16.mxu0 0
        %522 = vmatpush2.bf16.msra.mxu0 0
        %523 = vmatprep.subr.bf16.mxu0 0
        %524 = vmatpush2.bf16.msra.mxu0 0
        %525 = vmatprep.subr.bf16.mxu0 0
        %526 = vmatpush2.bf16.msra.mxu0 0
        %527 = vmatprep.subr.bf16.mxu0 0
        %528 = vmatpush2.bf16.msra.mxu0 0
        %529 = vmatprep.subr.bf16.mxu0 0
        %530 = vmatpush2.bf16.msra.mxu0 0
        %531 = vmatprep.subr.bf16.mxu0 0
        %532 = vmatpush2.bf16.msra.mxu0 0
        %533 = vmatprep.subr.bf16.mxu0 0
        %534 = vmatpush2.bf16.msra.mxu0 0
        %535 = vmatprep.subr.bf16.mxu0 0
        %536 = vmatpush2.bf16.msra.mxu0 0
        %537 = vmatprep.mubr.bf16.mxu0 0
        %538 = vmatmul.mubr.bf16.gmra.mxu0 %v503
        %v539 = vpop.f32.mrf.mxu0
        %v540 = vadd.f32 %v488, %v539
        %v541 = vpop.f32.mrf.mxu0
        %v542 = vpop.f32.mrf.mxu0
        %v543 = vadd.f32 %v488, %v542
        %v544 = vpop.f32.mrf.mxu0
        %545 = vdwg.mxu0
        %v546 = vtanh.pop %v540
        %v547 = vtanh.pop %v543
        %v548 = vsub.f32 0.0, %v546
        %v549 = vsub.f32 0.0, %v547
        %v550 = vmul.f32 %v548, 1.442695
        %v551 = vpow.pop %v550
        %v552 = vmul.f32 %v549, 1.442695
        %v553 = vpow.pop %v552
        %v554 = vld [vmem:[%s338] sm:$0xf]
        %v555 = vld [vmem:[%s338 + $0x4] sm:$0xf]
        %v556 = vunpack.c.l.bf16 %v554
        %v557 = vunpack.c.l.bf16 %v555
        %v558 = vld [vmem:[%s347] sm:$0xf]
        %v559 = vld [vmem:[%s347 + $0x4] sm:$0xf]
        %v560 = vunpack.c.l.bf16 %v558
        %v561 = vunpack.c.l.bf16 %v559
        %v562 = vsub.f32 %v556, %v560
        %v563 = vsub.f32 %v557, %v561
        %v564 = vmul.f32 %v540, 2.0
        %v565 = vmul.f32 %v543, 2.0
        %v566 = vsub.f32 %v564, %v556
        %v567 = vsub.f32 %v565, %v557
        %v568 = vsub.f32 %v566, %v560
        %v569 = vsub.f32 %v567, %v561
        %v570 = vmul.f32 %v562, %v568
        %v571 = vmul.f32 %v563, %v569
        %574 = vrot.lane.b32.xlu0 %v551, 96
        %v575 = vpop.permute.xlu0 %574
        %576 = vrot.lane.b32.xlu0 %v553, 96
        %v577 = vpop.permute.xlu0 %576
        %v580 = vmul.f32 %v570, %v575
        %v581 = vmul.f32 %v571, %v577
        %v582 = vlaneseq
        %v583 = vshrl.u32 %v582, 7
        %v584 = vadd.s32 %v583, 8
        %s585 = smul.u32 %s26, 16
        %v586 = vstv %s585
        %v587 = vadd.s32 %v583, %v586
        %v588 = vadd.s32 %v584, %v586
        %vm589 = vcmp.lt.s32.totalorder %v587, 24
        %vm590 = vcmp.lt.s32.totalorder %v588, 24
        %v591 = vsel %vm589, 1, 0
        %v592 = vsel %vm590, 1, 0
        %vm593 = vcmp.eq.s32.totalorder %v591, 1
        %vm594 = vcmp.eq.s32.totalorder %v592, 1
        %v595 = vsel %vm593, %v580, 0.0
        %v596 = vsel %vm594, %v581, 0.0
        %s597 = sld [smem:[#allocation2]]
        %v598 = vsel %vm431, %v595, 0.0
        %v599 = vsel %vm431, %v596, 0.0
        %v600 = vadd.f32 %v598, %v599
        %601 = vadd.xlane.f32.xlu0 %v600
        %v602 = vpop.xlane.xlu0 %601
        %v603 = vrot.slane %v602, 4
        %v604 = vadd.f32 %v602, %v603
        %v605 = vrot.slane %v604, 2
        %v606 = vadd.f32 %v604, %v605
        %v607 = vrot.slane %v606, 1
        %v608 = vadd.f32 %v606, %v607
        %s609 = vtos %v608
        %s610 = sadd.f32 %s597, %s609
        %s611 = scalar_lea.smem [#allocation2], 0
        %612 = sst [smem:[%s611]] %s610
        %p613 = scmp.eq.s32.totalorder %s26, 1
        // Predicated region
        $region73: #{tpu_custom_call.1} parent=47 // pred_check
          %p614 = pneg %p613
        $region74: #{tpu_custom_call.1} parent=47 // pred_check_branch
          %616 = sbr.rel (%p614) target = $region76
        $region75: #{tpu_custom_call.1} parent=47 // pred_region
          %s617 = sld [smem:[#allocation2]]
          %s618 = smul.f32 %s617, 0.020833334
          %s619 = scalar_lea.smem [#allocation12], 0
          %620 = sst [smem:[%s619]] %s618
        $region76: #{tpu_custom_call.1} parent=47 // pred_fallthru
          _
        // Predicated region
        $region77: #{tpu_custom_call.1} parent=47 // pred_check
          %p621 = pneg %p201
        $region78: #{tpu_custom_call.1} parent=47 // pred_check_branch
          %623 = sbr.rel (%p621) target = $region80
        $region79: #{tpu_custom_call.1} parent=47 // pred_region
          %s625 = ssub.s32 16, 16
          %626 = vsyncadd [#allocation5], %s625
          %629 = dma.smem_to_hbm [#allocation12], 16, %s7, [#allocation5]
        $region80: #{tpu_custom_call.1} parent=47 // pred_fallthru
          _
        // Predicated region
        $region81: #{tpu_custom_call.1} parent=47 // pred_check
          %p630 = pneg %p201
        $region82: #{tpu_custom_call.1} parent=47 // pred_check_branch
          %632 = sbr.rel (%p630) target = $region84
        $region83: #{tpu_custom_call.1} parent=47 // pred_region
          %633 = dma.done [#allocation5], 16
        $region84: #{tpu_custom_call.1} parent=47 // pred_fallthru
          _
        %634 = sfence
      $region48: #{tpu_custom_call.1} parent=5 // pred_fallthru
        _
      %p635 = scmp.le.s32.totalorder 2, %s21
      // Predicated region
      $region85: #{tpu_custom_call.1} parent=5 // pred_check
        %p636 = pneg %p635
      $region86: #{tpu_custom_call.1} parent=5 // pred_check_branch
        %638 = sbr.rel (%p636) target = $region88
      $region87: #{tpu_custom_call.1} parent=5 // pred_region
        %s639 = ssub.s32 %s21, 2
      $region88: #{tpu_custom_call.1} parent=5 // pred_fallthru
        _
    $region6: #{tpu_custom_call.1} parent=1 // loop_footer
      %s25 = sadd.s32 1, %s21
    $region7: #{tpu_custom_call.1} parent=1 // loop_footer_branch
      %20 = sbr.rel target = $region3
    $region8: #{tpu_custom_call.1} parent=1 // loop_exit
      _
    %640 = vsyncpa [#allocation4], 1
    %s641 = scalar_lea.sflag [#allocation4], 1
    %642 = vsyncpa %s641, 1
    %643 = vsyncpa [#allocation7], 1
    %s644 = scalar_lea.sflag [#allocation7], 1
    %645 = vsyncpa %s644, 1
    %646 = vsyncpa [#allocation10], 1
    %647 = vsyncpa [#allocation5], 1
    %s648 = scalar_lea.sflag [#allocation5], 1
    %649 = vsyncpa %s648, 1

</llo_original>
